<compile_context>
chip_gen: v5e
topology: v5e:2x2
jax: 0.10.0
libtpu: 0.0.40
codegen_flags: <defaults>
</compile_context>

<pallas_src>
import functools

import jax
import jax.numpy as jnp
from jax.experimental import pallas as pl
from jax.experimental.pallas import tpu as pltpu


# ----------------------------- glue (plain JAX) -----------------------------

def transformer_timestep_embedding(timesteps, embedding_dim, max_positions=10000):
    """Standard sinusoidal transformer timestep embedding, (B,) -> (B, dim)."""
    assert timesteps.ndim == 1
    half_dim = embedding_dim // 2
    emb = jnp.log(jnp.float32(max_positions)) / (half_dim - 1)
    emb = jnp.exp(jnp.arange(half_dim, dtype=jnp.float32) * -emb)
    emb = timesteps.astype(jnp.float32)[:, None] * emb[None, :]
    emb = jnp.concatenate([jnp.sin(emb), jnp.cos(emb)], axis=1)
    if embedding_dim % 2 == 1:
        emb = jnp.pad(emb, [[0, 0], [0, 1]])
    return emb


def _round_up(x, m):
    return ((x + m - 1) // m) * m


def _pick_vmem_limit():
    """VMEM budget with headroom: ~48 MiB on v7x (64 MiB physical), ~96 MiB on
    v5e/v6e (128 MiB physical).  Never hand the compiler the full capacity."""
    try:
        cap = pltpu.get_tpu_info().vmem_capacity_bytes
    except Exception:  # pragma: no cover - conservative fallback
        cap = 64 * 1024 * 1024
    return max(32 * 1024 * 1024, min(int(cap * 0.75), 100 * 1024 * 1024))


def prepare_params(params, cfg):
    """One-time parameter prep (bf16 weight cast, bias/proj reshapes) so the
    per-call forward does not re-read/re-write L*H*H*4B of HBM for the cast."""
    H, L = cfg["mlp_dim"], cfg["num_layers"]
    return dict(
        embed=params["embed"].astype(jnp.float32),            # (S, E)
        W=params["W"].astype(jnp.bfloat16),                    # (L, H, H) bf16
        b=params["b"].reshape(L, 1, H).astype(jnp.float32),    # (L, 1, H)
        Wf=params["Wf"].reshape(1, H).astype(jnp.float32),     # (1, H)
        bf=params["bf"].reshape(1, 1).astype(jnp.float32),     # (1, 1)
    )


# ----------------------------- Pallas kernel --------------------------------

def _mlp_kernel(x_ref, temb_ref, w_ref, b_ref, wf_ref, bf_ref, out_ref, h_ref,
                *, stream_weights):
    """Refs per grid step (bi, l):
        x_ref   : (TB, H)            bf16  embedded tokens (batch tile)
        temb_ref: (TB, H)            bf16  timestep embedding (batch tile)
        w_ref   : (1|L, H, H)        bf16  layer weights (streamed | resident)
        b_ref   : (1|L, 1, H)        f32   layer bias    (streamed | resident)
        wf_ref  : (1, H)             f32   final-projection weight row
        bf_ref  : (1, 1)             f32   final-projection bias
        out_ref : (TB, 1)            f32   per-row score
        h_ref   : (TB, H)            f32   persistent activation scratch
    """
    l = pl.program_id(1)
    num_layers = pl.num_programs(1)

    layer_idx = 0 if stream_weights else l
    w = w_ref[layer_idx]        # (H, H) bf16
    b = b_ref[layer_idx]        # (1, H) f32

    # Layer input: at l == 0 take the embedded tokens straight from x_ref
    # (bf16); otherwise the previous layer's f32 activation cast to bf16.
    # Avoids the layer-0 f32 store/reload round trip through h_ref.
    lhs = jnp.where(l == 0, x_ref[...], h_ref[...].astype(jnp.bfloat16))

    # MXU matmul (bf16 x bf16 -> f32), then bias + temb add and SiLU in f32.
    acc = jnp.dot(lhs, w, preferred_element_type=jnp.float32)
    h = acc + b + temb_ref[...].astype(jnp.float32)
    # TODO(synk): if bundle dumps show VALU saturation, switch the sigmoid to
    # pl.reciprocal(1 + jnp.exp(-h), approx=True) so exp and recip both ride EUP.
    h = h * jax.nn.sigmoid(h)

    @pl.when(l < num_layers - 1)
    def _carry():
        h_ref[...] = h

    @pl.when(l == num_layers - 1)
    def _finalize():
        # Final Linear(H, 1) as a VPU multiply + lane reduction (no N=1 MXU dot).
        score = jnp.sum(h * wf_ref[...], axis=-1, keepdims=True) + bf_ref[...]
        out_ref[...] = score.astype(out_ref.dtype)


def cat_mlp_score_forward(x_tokens, t, prepared, cfg, batch_tile=1024,
                          force_stream_weights=False):
    """Forward pass matching CatMLPScoreFunc.forward semantics."""
    B, _ = x_tokens.shape
    H = cfg["mlp_dim"]
    L = cfg["num_layers"]

    # Cheap glue outside the kernel: embedding gather + sinusoidal temb.
    temb = transformer_timestep_embedding(
        t * cfg["time_scale_factor"], H).astype(jnp.bfloat16)     # (B, H) bf16
    h0 = prepared["embed"][x_tokens].reshape(B, -1)               # (B, H)
    assert h0.shape[-1] == H, "mlp_dim must equal seq_len * embed_dim"
    h0 = h0.astype(jnp.bfloat16)

    vmem_limit = _pick_vmem_limit()

    # Batch tile: big enough that the per-layer matmul is MXU-bound rather than
    # weight-DMA bound (~TB FLOPs per streamed weight byte), sublane-aligned.
    TB = min(batch_tile, _round_up(B, 8))
    if TB >= B and B >= 1024:
        # Keep >= 2 batch tiles so the "parallel" axis can shard across the two
        # v7x TensorCores without dropping below an MXU-saturating tile.
        TB = _round_up((B + 1) // 2, 8)

    def _working_set_bytes(tb, weight_bytes):
        return (2 * tb * H * 2        # x (bf16), double-buffered
                + 2 * tb * H * 2      # temb (bf16), double-buffered
                + tb * H * 4          # persistent f32 activation scratch
                + 2 * tb * 4          # (TB, 1) f32 output, double-buffered
                + weight_bytes)

    resident_w_bytes = 2 * L * H * H * 2   # all layers, conservatively x2 buffers
    stream_w_bytes = 2 * H * H * 2         # one layer slab, double-buffered
    budget = int(0.85 * vmem_limit)

    resident = (not force_stream_weights) and (
        _working_set_bytes(TB, resident_w_bytes) <= budget)
    w_bytes = resident_w_bytes if resident else stream_w_bytes
    # If the working set still does not fit, shrink the batch tile (not below
    # 256 rows, where the weight DMA would become exposed again).
    while TB > 256 and _working_set_bytes(TB, w_bytes) > budget:
        TB = _round_up(max(256, TB // 2), 8)

    Bp = _round_up(B, TB)
    if Bp != B:
        h0 = jnp.pad(h0, ((0, Bp - B), (0, 0)))
        temb = jnp.pad(temb, ((0, Bp - B), (0, 0)))

    grid = (Bp // TB, L)                                          # (parallel, arbitrary)

    if resident:
        # All layer weights stay resident in VMEM; never re-DMAed per batch tile.
        w_spec = pl.BlockSpec((L, H, H), lambda bi, li: (0, 0, 0))
        b_spec = pl.BlockSpec((L, 1, H), lambda bi, li: (0, 0, 0))
    else:
        # Stream one layer's weight slab per grid step (prefetched behind l-1).
        w_spec = pl.BlockSpec((1, H, H), lambda bi, li: (li, 0, 0))
        b_spec = pl.BlockSpec((1, 1, H), lambda bi, li: (li, 0, 0))

    kernel = functools.partial(_mlp_kernel, stream_weights=not resident)

    out = pl.pallas_call(
        kernel,
        out_shape=jax.ShapeDtypeStruct((Bp, 1), jnp.float32),
        grid=grid,
        in_specs=[
            pl.BlockSpec((TB, H), lambda bi, li: (bi, 0)),        # embedded tokens (bf16)
            pl.BlockSpec((TB, H), lambda bi, li: (bi, 0)),        # temb (bf16)
            w_spec,                                               # layer weights
            b_spec,                                               # layer bias
            pl.BlockSpec((1, H), lambda bi, li: (0, 0)),          # final weight row
            pl.BlockSpec((1, 1), lambda bi, li: (0, 0)),          # final bias
        ],
        out_specs=pl.BlockSpec((TB, 1), lambda bi, li: (bi, 0)),
        scratch_shapes=[pltpu.VMEM((TB, H), jnp.float32)],        # persistent activation
        compiler_params=pltpu.CompilerParams(
            dimension_semantics=("parallel", "arbitrary"),
            vmem_limit_bytes=vmem_limit,
        ),
    )(h0, temb, prepared["W"], prepared["b"], prepared["Wf"], prepared["bf"])

    return out[:B]


# -------------------------- pure-JAX reference -------------------------------

def _reference(x_tokens, t, params, cfg):
    """Reference mirroring the kernel numerics (bf16 matmuls, bf16 temb)."""
    H = cfg["mlp_dim"]
    temb = transformer_timestep_embedding(t * cfg["time_scale_factor"], H)
    temb = temb.astype(jnp.bfloat16).astype(jnp.float32)
    h = params["embed"][x_tokens].reshape(x_tokens.shape[0], -1).astype(jnp.float32)
    for l in range(cfg["num_layers"]):
        hw = jnp.dot(h.astype(jnp.bfloat16),
                     params["W"][l].astype(jnp.bfloat16),
                     preferred_element_type=jnp.float32)
        h = hw + params["b"][l][None, :] + temb
        h = h * jax.nn.sigmoid(h)
    score = jnp.sum(h * params["Wf"].reshape(1, -1), axis=-1, keepdims=True)
    return score + params["bf"].reshape(1, 1)


# --------------------------------- main --------------------------------------

if __name__ == "__main__":
    # Small config: S categories, D tokens per sample, embed_dim E,
    # hidden/mlp_dim H = D * E (required by the original module's first Linear).
    cfg = dict(S=16, embed_dim=4, seq_len=8, mlp_dim=32, num_layers=2,
               time_scale_factor=1000.0)
    B = 2
    D, E, H, L = cfg["seq_len"], cfg["embed_dim"], cfg["mlp_dim"], cfg["num_layers"]

    key = jax.random.PRNGKey(0)
    k_emb, k_w, k_b, k_wf, k_bf, k_x, k_t, k_x2, k_t2 = jax.random.split(key, 9)
    params = {
        "embed": 0.02 * jax.random.normal(k_emb, (cfg["S"], E), jnp.float32),
        "W": 0.1 * jax.random.normal(k_w, (L, H, H), jnp.float32),
        "b": 0.1 * jax.random.normal(k_b, (L, H), jnp.float32),
        "Wf": 0.1 * jax.random.normal(k_wf, (H, 1), jnp.float32),
        "bf": 0.1 * jax.random.normal(k_bf, (1, 1), jnp.float32),
    }
    prepared = prepare_params(params, cfg)

    x_tokens = jax.random.randint(k_x, (B, D), 0, cfg["S"], dtype=jnp.int32)
    t = jax.random.uniform(k_t, (B,), jnp.float32)

    # Resident-weights path (default for small H*L).
    out = jax.block_until_ready(cat_mlp_score_forward(x_tokens, t, prepared, cfg))
    ref = _reference(x_tokens, t, params, cfg)
    assert out.shape == (B, 1), f"bad output shape {out.shape}"
    assert jnp.allclose(out, ref, atol=2e-3, rtol=2e-3), (
        f"resident path mismatch: max abs diff {jnp.max(jnp.abs(out - ref))}")

    # Streamed-weights path (per-layer slab, as used when L*H*H does not fit VMEM).
    out_s = jax.block_until_ready(
        cat_mlp_score_forward(x_tokens, t, prepared, cfg, force_stream_weights=True))
    assert jnp.allclose(out_s, ref, atol=2e-3, rtol=2e-3), (
        f"streamed path mismatch: max abs diff {jnp.max(jnp.abs(out_s - ref))}")

    # Multi-tile + padded-batch check (exercises the batch grid axis & padding).
    B2 = 20
    x2 = jax.random.randint(k_x2, (B2, D), 0, cfg["S"], dtype=jnp.int32)
    t2 = jax.random.uniform(k_t2, (B2,), jnp.float32)
    out2 = jax.block_until_ready(
        cat_mlp_score_forward(x2, t2, prepared, cfg, batch_tile=8))
    ref2 = _reference(x2, t2, params, cfg)
    assert out2.shape == (B2, 1), f"bad output shape {out2.shape}"
    assert jnp.allclose(out2, ref2, atol=2e-3, rtol=2e-3), (
        f"multi-tile path mismatch: max abs diff {jnp.max(jnp.abs(out2 - ref2))}")

    print("KERNEL_OK")
</pallas_src>

<mosaic_0001>
module attributes {stable_mosaic.version = 11 : i64} {
  func.func @_mlp_kernel(%arg0: i32, %arg1: i32, %arg2: memref<8x32xbf16, #tpu.memory_space<vmem>>, %arg3: memref<8x32xbf16, #tpu.memory_space<vmem>>, %arg4: memref<2x32x32xbf16, #tpu.memory_space<vmem>>, %arg5: memref<2x1x32xf32, #tpu.memory_space<vmem>>, %arg6: memref<1x32xf32, #tpu.memory_space<vmem>>, %arg7: memref<1x1xf32, #tpu.memory_space<vmem>>, %arg8: memref<8x1xf32, #tpu.memory_space<vmem>>, %arg9: memref<8x32xf32, #tpu.memory_space<vmem>>) attributes {dimension_semantics = [#tpu.dimension_semantics<parallel>, #tpu.dimension_semantics<arbitrary>], iteration_bounds = array<i64: 1, 2>, scalar_prefetch = 0 : i64, scratch_operands = 1 : i64, tpu.core_type = #tpu.core_type<tc>, window_params = [{transform_indices = @transform_0, window_bounds = array<i64: 8, 32>}, {transform_indices = @transform_1, window_bounds = array<i64: 8, 32>}, {pipeline_mode = #tpu.pipeline_mode<synchronous>, transform_indices = @transform_2, window_bounds = array<i64: 2, 32, 32>}, {pipeline_mode = #tpu.pipeline_mode<synchronous>, transform_indices = @transform_3, window_bounds = array<i64: 2, 1, 32>}, {pipeline_mode = #tpu.pipeline_mode<synchronous>, transform_indices = @transform_4, window_bounds = array<i64: 1, 32>}, {pipeline_mode = #tpu.pipeline_mode<synchronous>, transform_indices = @transform_5, window_bounds = array<i64: 1, 1>}, {transform_indices = @transform_6, window_bounds = array<i64: 8, 1>}]} {
    %0 = arith.index_cast %arg1 : i32 to index
    %c0 = arith.constant 0 : index
    %c0_0 = arith.constant 0 : index
    %1 = vector.load %arg4[%0, %c0, %c0_0] : memref<2x32x32xbf16, #tpu.memory_space<vmem>>, vector<1x32x32xbf16>
    %2 = vector.shape_cast %1 : vector<1x32x32xbf16> to vector<32x32xbf16>
    %3 = arith.index_cast %arg1 : i32 to index
    %c0_1 = arith.constant 0 : index
    %c0_2 = arith.constant 0 : index
    %4 = vector.load %arg5[%3, %c0_1, %c0_2] : memref<2x1x32xf32, #tpu.memory_space<vmem>>, vector<1x1x32xf32>
    %5 = vector.shape_cast %4 : vector<1x1x32xf32> to vector<1x32xf32>
    %c0_i32 = arith.constant 0 : i32
    %6 = arith.cmpi eq, %arg1, %c0_i32 : i32
    %c0_3 = arith.constant 0 : index
    %c0_4 = arith.constant 0 : index
    %7 = vector.load %arg2[%c0_3, %c0_4] : memref<8x32xbf16, #tpu.memory_space<vmem>>, vector<8x32xbf16>
    %c0_5 = arith.constant 0 : index
    %c0_6 = arith.constant 0 : index
    %8 = vector.load %arg9[%c0_5, %c0_6] : memref<8x32xf32, #tpu.memory_space<vmem>>, vector<8x32xf32>
    %9 = arith.truncf %8 : vector<8x32xf32> to vector<8x32xbf16>
    %10 = arith.select %6, %7, %9 : vector<8x32xbf16>
    %cst = arith.constant dense<0.000000e+00> : vector<8x32xf32>
    %11 = tpu.matmul %10, %2, %cst {dimension_numbers = #tpu.dot_dimension_numbers<[1], [0], [0], [1], [0, 0, 1, 1], [], []>} : vector<8x32xbf16>, vector<32x32xbf16>, vector<8x32xf32> -> vector<8x32xf32>
    %12 = vector.broadcast %5 : vector<1x32xf32> to vector<8x32xf32>
    %13 = arith.addf %11, %12 : vector<8x32xf32>
    %c0_7 = arith.constant 0 : index
    %c0_8 = arith.constant 0 : index
    %14 = vector.load %arg3[%c0_7, %c0_8] : memref<8x32xbf16, #tpu.memory_space<vmem>>, vector<8x32xbf16>
    %15 = arith.extf %14 : vector<8x32xbf16> to vector<8x32xf32>
    %16 = arith.addf %13, %15 : vector<8x32xf32>
    %17 = arith.negf %16 : vector<8x32xf32>
    %18 = math.exp %17 : vector<8x32xf32>
    %cst_9 = arith.constant 1.000000e+00 : f32
    %19 = vector.broadcast %cst_9 : f32 to vector<8x32xf32>
    %20 = arith.addf %19, %18 : vector<8x32xf32>
    %21 = arith.divf %19, %20 : vector<8x32xf32>
    %22 = arith.mulf %16, %21 : vector<8x32xf32>
    %c1_i32 = arith.constant 1 : i32
    %23 = arith.cmpi slt, %arg1, %c1_i32 : i32
    %24 = arith.extui %23 : i1 to i32
    %c0_i32_10 = arith.constant 0 : i32
    %25 = arith.cmpi ne, %24, %c0_i32_10 : i32
    scf.if %25 {
      %c0_13 = arith.constant 0 : index
      %c0_14 = arith.constant 0 : index
      %29 = vector.load %arg9[%c0_13, %c0_14] : memref<8x32xf32, #tpu.memory_space<vmem>>, vector<8x32xf32>
      tpu.vector_store %arg9[%c0_13, %c0_14], %22 {strides = array<i32>} : memref<8x32xf32, #tpu.memory_space<vmem>>, vector<8x32xf32>,
    } else {
    }
    %c1_i32_11 = arith.constant 1 : i32
    %26 = arith.cmpi eq, %arg1, %c1_i32_11 : i32
    %27 = arith.extui %26 : i1 to i32
    %c0_i32_12 = arith.constant 0 : i32
    %28 = arith.cmpi ne, %27, %c0_i32_12 : i32
    scf.if %28 {
      %c0_13 = arith.constant 0 : index
      %c0_14 = arith.constant 0 : index
      %29 = vector.load %arg6[%c0_13, %c0_14] : memref<1x32xf32, #tpu.memory_space<vmem>>, vector<1x32xf32>
      %30 = vector.broadcast %29 : vector<1x32xf32> to vector<8x32xf32>
      %31 = arith.mulf %22, %30 : vector<8x32xf32>
      %cst_15 = arith.constant dense<0.000000e+00> : vector<8xf32>
      %32 = vector.multi_reduction <add>, %31, %cst_15 [1] : vector<8x32xf32> to vector<8xf32>
      %33 = vector.shape_cast %32 : vector<8xf32> to vector<8x1xf32>
      %c0_16 = arith.constant 0 : index
      %c0_17 = arith.constant 0 : index
      %34 = vector.load %arg7[%c0_16, %c0_17] : memref<1x1xf32, #tpu.memory_space<vmem>>, vector<1x1xf32>
      %35 = vector.broadcast %34 : vector<1x1xf32> to vector<8x1xf32>
      %36 = arith.addf %33, %35 : vector<8x1xf32>
      %c0_18 = arith.constant 0 : index
      %c0_19 = arith.constant 0 : index
      %37 = vector.load %arg8[%c0_18, %c0_19] : memref<8x1xf32, #tpu.memory_space<vmem>>, vector<8x1xf32>
      tpu.vector_store %arg8[%c0_18, %c0_19], %36 {strides = array<i32>} : memref<8x1xf32, #tpu.memory_space<vmem>>, vector<8x1xf32>,
    } else {
    }
    return
  }
  func.func @transform_0(%arg0: i32, %arg1: i32) -> (i32, i32) {
    %c0_i32 = arith.constant 0 : i32
    %c0_i32_0 = arith.constant 0 : i32
    return %arg0, %c0_i32 : i32, i32
  }
  func.func @transform_1(%arg0: i32, %arg1: i32) -> (i32, i32) {
    %c0_i32 = arith.constant 0 : i32
    %c0_i32_0 = arith.constant 0 : i32
    return %arg0, %c0_i32 : i32, i32
  }
  func.func @transform_2(%arg0: i32, %arg1: i32) -> (i32, i32, i32) {
    %c0_i32 = arith.constant 0 : i32
    %c0_i32_0 = arith.constant 0 : i32
    %c0_i32_1 = arith.constant 0 : i32
    %c0_i32_2 = arith.constant 0 : i32
    return %c0_i32, %c0_i32_0, %c0_i32_1 : i32, i32, i32
  }
  func.func @transform_3(%arg0: i32, %arg1: i32) -> (i32, i32, i32) {
    %c0_i32 = arith.constant 0 : i32
    %c0_i32_0 = arith.constant 0 : i32
    %c0_i32_1 = arith.constant 0 : i32
    %c0_i32_2 = arith.constant 0 : i32
    return %c0_i32, %c0_i32_0, %c0_i32_1 : i32, i32, i32
  }
  func.func @transform_4(%arg0: i32, %arg1: i32) -> (i32, i32) {
    %c0_i32 = arith.constant 0 : i32
    %c0_i32_0 = arith.constant 0 : i32
    %c0_i32_1 = arith.constant 0 : i32
    return %c0_i32, %c0_i32_0 : i32, i32
  }
  func.func @transform_5(%arg0: i32, %arg1: i32) -> (i32, i32) {
    %c0_i32 = arith.constant 0 : i32
    %c0_i32_0 = arith.constant 0 : i32
    %c0_i32_1 = arith.constant 0 : i32
    return %c0_i32, %c0_i32_0 : i32, i32
  }
  func.func @transform_6(%arg0: i32, %arg1: i32) -> (i32, i32) {
    %c0_i32 = arith.constant 0 : i32
    %c0_i32_0 = arith.constant 0 : i32
    return %arg0, %c0_i32 : i32, i32
  }
}

</mosaic_0001>

<llo_original>
// kernel: tpu_custom_call.1
$region0: #{tpu_custom_call.1}
  #allocation0 [shape = 'u32[]', space=smem, size = 0x4, offset = 0x4, fixed_abs, tag = 'smem constant byte address 0x4 - core index']
  #allocation1 [shape = 'u32[72,128]{1,0:T(1,128)}', space=vmem, size = 0x9000, scoped, tag = 'internal scratch']
  #allocation2 [shape = 'f32[8,32]{1,0:T(8,128)}', space=vmem, size = 0x1000, scoped, tag = 'scratch operand']
  #allocation3 [shape = 'f32[1,1]{1,0:T(1,128)S(1)}', space=vmem, size = 0x200, scoped, tag = 'scoped memory for tpu_custom_call.1']
  %s0 = inlined_call_operand.hbm [shape: bf16[8,32], index: 0, kind: input, shape index: {}]
  %s1 = inlined_call_operand.hbm [shape: bf16[8,32], index: 1, kind: input, shape index: {}]
  %s2 = inlined_call_operand.hbm [shape: bf16[2,32,32], index: 2, kind: input, shape index: {}]
  %s3 = inlined_call_operand.vmem [shape: f32[2,1,32], index: 3, kind: input, shape index: {}]
  %s4 = inlined_call_operand.vmem [shape: f32[1,32], index: 4, kind: input, shape index: {}]
  %s5 = inlined_call_operand.<no memory space> [shape: f32[1,1], index: 5, kind: input, shape index: {}]
  %s6 = inlined_call_operand.vmem [shape: f32[8,1], index: 6, kind: output, shape index: {}]
  %s7 = sld [smem:[#allocation0]]
  $region77: #{tpu_custom_call.1} parent=0
    _
  %s9 = ssub.s32 1, %s7
  %s10 = scalar_select 0, %s9, %s7
  %v11 = vstv %s5
  %12 = vst [vmem:[#allocation3] sm:$0x1] %v11
  $region1: #{tpu_custom_call.1} parent=0
    #allocation4 [shape = 'u8[2048]{0}', space=vmem, size = 0x800, scoped, tag = 'input window, operand 0, single buffered']
    #allocation5 [shape = 's32[2]{0}', space=sflag, size = 0x8, scoped, tag = 'scoped memory for tpu_custom_call.1']
    #allocation6 [shape = 'u8[2048]{0}', space=vmem, size = 0x800, scoped, tag = 'input window, operand 1, single buffered']
    #allocation7 [shape = 's32[1]{0}', space=sflag, size = 0x4, scoped, tag = 'scoped memory for tpu_custom_call.1']
    #allocation8 [shape = 'u8[16384]{0}', space=vmem, size = 0x4000, scoped, tag = 'input window, operand 2, single buffered']
    %13 = vsyncpa [#allocation5], 0
    %14 = vsyncpa [#allocation7], 0
    loop: start=0, step=1, limit=4
    $region2: #{tpu_custom_call.1} parent=1 // loop_pre_header
      _
    $region3: #{tpu_custom_call.1} parent=1 // loop_header
      %s16 = sphi 0, %s20
      %p17 = scmp.ge.s32.totalorder %s16, 4
      %s23 = sphi 0, %s35
      %s24 = sphi 0, %s31
      %s25 = sphi 0, %s23
      %s26 = sphi 0, %s24
      %s27 = sphi 0, %s25
      %s28 = sphi 0, %s26
      %s38 = sphi 0, %s40
      %s41 = sphi 0, %s38
      %s42 = sphi 0, %s41
      %s58 = sphi 0, %s42
      %s64 = sphi 0, %s66
      %s67 = sphi 0, %s64
      %s68 = sphi 0, %s67
      %s84 = sphi 0, %s68
      %s88 = sphi 0, %s88
      %s90 = sphi 0, %s88
      %s91 = sphi 0, %s90
      %s105 = sphi 0, %s91
      %s109 = sphi 0, %s109
      %s111 = sphi 0, %s109
      %s112 = sphi 0, %s111
      %s126 = sphi 0, %s112
      %s130 = sphi 0, %s130
      %s132 = sphi 0, %s130
      %s133 = sphi 0, %s132
      %s147 = sphi 0, %s133
      %s151 = sphi 0, %s151
      %s153 = sphi 0, %s151
      %s154 = sphi 0, %s153
      %s168 = sphi 0, %s154
      %s174 = sphi 0, %s176
      %s177 = sphi 0, %s174
      %s178 = sphi 0, %s177
      %s194 = sphi 0, %s178
    $region4: #{tpu_custom_call.1} parent=1 // loop_header_branch
      %19 = sbr.rel (%p17) target = $region8
    $region5: #{tpu_custom_call.1} parent=1 // loop_body
      %s21 = ssub.s32 %s16, 1
      %s22 = ssub.s32 %s16, 2
      %s29 = sadd.s32 1, %s24
      %p30 = scmp.ge.s32.totalorder %s29, 2
      %s31 = scalar_select %p30, 0, %s29
      %s32 = sadd.s32 1, %s23
      %s33 = scalar_select %p30, %s32, %s23
      %p34 = scmp.ge.s32.totalorder %s33, 1
      %s35 = scalar_select %p34, 0, %s33
      %s36 = ssub.s32 %s23, %s35
      %p37 = scmp.eq.s32.totalorder %s36, 0
      %s39 = sadd.s32 %s38, 1
      %s40 = scalar_select %p37, %s38, %s39
      %p43 = pneg %p37
      %p44 = scmp.eq.s32.totalorder %s16, 1
      %p45 = por %p43, %p44
      %p46 = scmp.ne.s32.totalorder %s38, %s41
      %p47 = scmp.eq.s32.totalorder %s16, 0
      %p48 = por %p46, %p47
      %p49 = scmp.ne.s32.totalorder %s38, %s41
      %p50 = scmp.eq.s32.totalorder %s21, 1
      %p51 = por %p49, %p50
      %p52 = scmp.ne.s32.totalorder %s41, %s42
      %p53 = scmp.eq.s32.totalorder %s21, 0
      %p54 = por %p52, %p53
      %p55 = scmp.ne.s32.totalorder %s41, %s42
      %p56 = scmp.eq.s32.totalorder %s22, 1
      %p57 = por %p55, %p56
      %p59 = scmp.ne.s32.totalorder %s42, %s58
      %p60 = scmp.eq.s32.totalorder %s22, 0
      %p61 = por %p59, %p60
      %s62 = ssub.s32 %s23, %s35
      %p63 = scmp.eq.s32.totalorder %s62, 0
      %s65 = sadd.s32 %s64, 1
      %s66 = scalar_select %p63, %s64, %s65
      %p69 = pneg %p63
      %p70 = scmp.eq.s32.totalorder %s16, 1
      %p71 = por %p69, %p70
      %p72 = scmp.ne.s32.totalorder %s64, %s67
      %p73 = scmp.eq.s32.totalorder %s16, 0
      %p74 = por %p72, %p73
      %p75 = scmp.ne.s32.totalorder %s64, %s67
      %p76 = scmp.eq.s32.totalorder %s21, 1
      %p77 = por %p75, %p76
      %p78 = scmp.ne.s32.totalorder %s67, %s68
      %p79 = scmp.eq.s32.totalorder %s21, 0
      %p80 = por %p78, %p79
      %p81 = scmp.ne.s32.totalorder %s67, %s68
      %p82 = scmp.eq.s32.totalorder %s22, 1
      %p83 = por %p81, %p82
      %p85 = scmp.ne.s32.totalorder %s68, %s84
      %p86 = scmp.eq.s32.totalorder %s22, 0
      %p87 = por %p85, %p86
      %s89 = sadd.s32 %s88, 1
      %p92 = scmp.eq.s32.totalorder %s16, 1
      %p93 = scmp.ne.s32.totalorder %s88, %s90
      %p94 = scmp.eq.s32.totalorder %s16, 0
      %p95 = por %p93, %p94
      %p96 = scmp.ne.s32.totalorder %s88, %s90
      %p97 = scmp.eq.s32.totalorder %s21, 1
      %p98 = por %p96, %p97
      %p99 = scmp.ne.s32.totalorder %s90, %s91
      %p100 = scmp.eq.s32.totalorder %s21, 0
      %p101 = por %p99, %p100
      %p102 = scmp.ne.s32.totalorder %s90, %s91
      %p103 = scmp.eq.s32.totalorder %s22, 1
      %p104 = por %p102, %p103
      %p106 = scmp.ne.s32.totalorder %s91, %s105
      %p107 = scmp.eq.s32.totalorder %s22, 0
      %p108 = por %p106, %p107
      %s110 = sadd.s32 %s109, 1
      %p113 = scmp.eq.s32.totalorder %s16, 1
      %p114 = scmp.ne.s32.totalorder %s109, %s111
      %p115 = scmp.eq.s32.totalorder %s16, 0
      %p116 = por %p114, %p115
      %p117 = scmp.ne.s32.totalorder %s109, %s111
      %p118 = scmp.eq.s32.totalorder %s21, 1
      %p119 = por %p117, %p118
      %p120 = scmp.ne.s32.totalorder %s111, %s112
      %p121 = scmp.eq.s32.totalorder %s21, 0
      %p122 = por %p120, %p121
      %p123 = scmp.ne.s32.totalorder %s111, %s112
      %p124 = scmp.eq.s32.totalorder %s22, 1
      %p125 = por %p123, %p124
      %p127 = scmp.ne.s32.totalorder %s112, %s126
      %p128 = scmp.eq.s32.totalorder %s22, 0
      %p129 = por %p127, %p128
      %s131 = sadd.s32 %s130, 1
      %p134 = scmp.eq.s32.totalorder %s16, 1
      %p135 = scmp.ne.s32.totalorder %s130, %s132
      %p136 = scmp.eq.s32.totalorder %s16, 0
      %p137 = por %p135, %p136
      %p138 = scmp.ne.s32.totalorder %s130, %s132
      %p139 = scmp.eq.s32.totalorder %s21, 1
      %p140 = por %p138, %p139
      %p141 = scmp.ne.s32.totalorder %s132, %s133
      %p142 = scmp.eq.s32.totalorder %s21, 0
      %p143 = por %p141, %p142
      %p144 = scmp.ne.s32.totalorder %s132, %s133
      %p145 = scmp.eq.s32.totalorder %s22, 1
      %p146 = por %p144, %p145
      %p148 = scmp.ne.s32.totalorder %s133, %s147
      %p149 = scmp.eq.s32.totalorder %s22, 0
      %p150 = por %p148, %p149
      %s152 = sadd.s32 %s151, 1
      %p155 = scmp.eq.s32.totalorder %s16, 1
      %p156 = scmp.ne.s32.totalorder %s151, %s153
      %p157 = scmp.eq.s32.totalorder %s16, 0
      %p158 = por %p156, %p157
      %p159 = scmp.ne.s32.totalorder %s151, %s153
      %p160 = scmp.eq.s32.totalorder %s21, 1
      %p161 = por %p159, %p160
      %p162 = scmp.ne.s32.totalorder %s153, %s154
      %p163 = scmp.eq.s32.totalorder %s21, 0
      %p164 = por %p162, %p163
      %p165 = scmp.ne.s32.totalorder %s153, %s154
      %p166 = scmp.eq.s32.totalorder %s22, 1
      %p167 = por %p165, %p166
      %p169 = scmp.ne.s32.totalorder %s154, %s168
      %p170 = scmp.eq.s32.totalorder %s22, 0
      %p171 = por %p169, %p170
      %s172 = ssub.s32 %s23, %s35
      %p173 = scmp.eq.s32.totalorder %s172, 0
      %s175 = sadd.s32 %s174, 1
      %s176 = scalar_select %p173, %s174, %s175
      %p179 = pneg %p173
      %p180 = scmp.eq.s32.totalorder %s16, 1
      %p181 = por %p179, %p180
      %p182 = scmp.ne.s32.totalorder %s174, %s177
      %p183 = scmp.eq.s32.totalorder %s16, 0
      %p184 = por %p182, %p183
      %p185 = scmp.ne.s32.totalorder %s174, %s177
      %p186 = scmp.eq.s32.totalorder %s21, 1
      %p187 = por %p185, %p186
      %p188 = scmp.ne.s32.totalorder %s177, %s178
      %p189 = scmp.eq.s32.totalorder %s21, 0
      %p190 = por %p188, %p189
      %p191 = scmp.ne.s32.totalorder %s177, %s178
      %p192 = scmp.eq.s32.totalorder %s22, 1
      %p193 = por %p191, %p192
      %p195 = scmp.ne.s32.totalorder %s178, %s194
      %p196 = scmp.eq.s32.totalorder %s22, 0
      %p197 = por %p195, %p196
      %p198 = scmp.le.s32.totalorder 1, %s16
      %p199 = scmp.lt.s32.totalorder %s16, 3
      %p200 = pnand %p198, %p199
      %p201 = pneg %p200
      // Predicated region
      $region9: #{tpu_custom_call.1} parent=5 // pred_check
        _
      $region10: #{tpu_custom_call.1} parent=5 // pred_check_branch
        %203 = sbr.rel (%p200) target = $region12
      $region11: #{tpu_custom_call.1} parent=5 // pred_region
        %s204 = ssub.s32 %s16, 1
        // Predicated region
        $region13: #{tpu_custom_call.1} parent=11 // pred_check
          %p205 = pneg %p54
        $region14: #{tpu_custom_call.1} parent=11 // pred_check_branch
          %207 = sbr.rel (%p205) target = $region16
        $region15: #{tpu_custom_call.1} parent=11 // pred_region
          %209 = vsyncadd [#allocation5], 0
          %s210 = smul.addr %s25, 4
          %s211 = scalar_lea.hbm %s0, %s210
          %s213 = sshll.u32 %s211, 4
          %s214 = int_to_ptr.hbm [resolvable:$true] %s213
          %s215 = sshll.u32 [#allocation4], 4
          %s216 = int_to_ptr.vmem [resolvable:$true] %s215
          %218 = dma.hbm_to_vmem [thread:$0]  %s214, 64, %s216, [#allocation5]
        $region16: #{tpu_custom_call.1} parent=11 // pred_fallthru
          _
        // Predicated region
        $region17: #{tpu_custom_call.1} parent=11 // pred_check
          %p219 = pneg %p80
        $region18: #{tpu_custom_call.1} parent=11 // pred_check_branch
          %221 = sbr.rel (%p219) target = $region20
        $region19: #{tpu_custom_call.1} parent=11 // pred_region
          %223 = vsyncadd [#allocation7], 0
          %s224 = smul.addr %s25, 4
          %s225 = scalar_lea.hbm %s1, %s224
          %s227 = sshll.u32 %s225, 4
          %s228 = int_to_ptr.hbm [resolvable:$true] %s227
          %s229 = sshll.u32 [#allocation6], 4
          %s230 = int_to_ptr.vmem [resolvable:$true] %s229
          %232 = dma.hbm_to_vmem [thread:$0]  %s228, 64, %s230, [#allocation7]
        $region20: #{tpu_custom_call.1} parent=11 // pred_fallthru
          _
        // Predicated region
        $region21: #{tpu_custom_call.1} parent=11 // pred_check
          %p233 = pneg %p101
        $region22: #{tpu_custom_call.1} parent=11 // pred_check_branch
          %235 = sbr.rel (%p233) target = $region24
        $region23: #{tpu_custom_call.1} parent=11 // pred_region
          %237 = vsyncadd [#allocation7], 0
          %s238 = sshll.u32 %s2, 4
          %s239 = int_to_ptr.hbm [resolvable:$true] %s238
          %s240 = sshll.u32 [#allocation8], 4
          %s241 = int_to_ptr.vmem [resolvable:$true] %s240
          %246 = dma.hbm_to_vmem [thread:$0]  %s239, 512, %s241, [#allocation7], 64, 64, 4
        $region24: #{tpu_custom_call.1} parent=11 // pred_fallthru
          _
        // Predicated region
        $region25: #{tpu_custom_call.1} parent=11 // pred_check
          %p247 = pneg %p122
        $region26: #{tpu_custom_call.1} parent=11 // pred_check_branch
          %249 = sbr.rel (%p247) target = $region28
        $region27: #{tpu_custom_call.1} parent=11 // pred_region
          _
        $region28: #{tpu_custom_call.1} parent=11 // pred_fallthru
          _
        // Predicated region
        $region29: #{tpu_custom_call.1} parent=11 // pred_check
          %p250 = pneg %p143
        $region30: #{tpu_custom_call.1} parent=11 // pred_check_branch
          %252 = sbr.rel (%p250) target = $region32
        $region31: #{tpu_custom_call.1} parent=11 // pred_region
          _
        $region32: #{tpu_custom_call.1} parent=11 // pred_fallthru
          _
        // Predicated region
        $region33: #{tpu_custom_call.1} parent=11 // pred_check
          %p253 = pneg %p164
        $region34: #{tpu_custom_call.1} parent=11 // pred_check_branch
          %255 = sbr.rel (%p253) target = $region36
        $region35: #{tpu_custom_call.1} parent=11 // pred_region
          _
        $region36: #{tpu_custom_call.1} parent=11 // pred_fallthru
          _
      $region12: #{tpu_custom_call.1} parent=5 // pred_fallthru
        _
      %p256 = scmp.lt.s32.totalorder %s16, 2
      // Predicated region
      $region37: #{tpu_custom_call.1} parent=5 // pred_check
        %p257 = pneg %p256
      $region38: #{tpu_custom_call.1} parent=5 // pred_check_branch
        %259 = sbr.rel (%p257) target = $region40
      $region39: #{tpu_custom_call.1} parent=5 // pred_region
        _
      $region40: #{tpu_custom_call.1} parent=5 // pred_fallthru
        _
      %p260 = scmp.le.s32.totalorder 1, %s16
      %p261 = scmp.lt.s32.totalorder %s16, 3
      %p262 = pnand %p260, %p261
      %p263 = pneg %p262
      // Predicated region
      $region41: #{tpu_custom_call.1} parent=5 // pred_check
        _
      $region42: #{tpu_custom_call.1} parent=5 // pred_check_branch
        %265 = sbr.rel (%p262) target = $region44
      $region43: #{tpu_custom_call.1} parent=5 // pred_region
        %s266 = ssub.s32 %s16, 1
        // Predicated region
        $region45: #{tpu_custom_call.1} parent=43 // pred_check
          %p267 = pneg %p54
        $region46: #{tpu_custom_call.1} parent=43 // pred_check_branch
          %269 = sbr.rel (%p267) target = $region48
        $region47: #{tpu_custom_call.1} parent=43 // pred_region
          %271 = dma.done [#allocation5], 64
        $region48: #{tpu_custom_call.1} parent=43 // pred_fallthru
          _
        // Predicated region
        $region49: #{tpu_custom_call.1} parent=43 // pred_check
          %p272 = pneg %p80
        $region50: #{tpu_custom_call.1} parent=43 // pred_check_branch
          %274 = sbr.rel (%p272) target = $region52
        $region51: #{tpu_custom_call.1} parent=43 // pred_region
          %276 = dma.done [#allocation7], 64
        $region52: #{tpu_custom_call.1} parent=43 // pred_fallthru
          _
        // Predicated region
        $region53: #{tpu_custom_call.1} parent=43 // pred_check
          %p277 = pneg %p101
        $region54: #{tpu_custom_call.1} parent=43 // pred_check_branch
          %279 = sbr.rel (%p277) target = $region56
        $region55: #{tpu_custom_call.1} parent=43 // pred_region
          %281 = dma.done [#allocation7], 512
        $region56: #{tpu_custom_call.1} parent=43 // pred_fallthru
          _
        %p282 = pneg %p54
        %p283 = pneg %p51
        %p284 = pneg %p80
        %p285 = pneg %p77
        %p286 = pneg %p101
        %p287 = pneg %p98
        %p288 = pneg %p122
        %p289 = pneg %p119
        %p290 = pneg %p143
        %p291 = pneg %p140
        %p292 = pneg %p164
        %p293 = pneg %p161
        %p294 = pneg %p190
        %p295 = pneg %p187
        %p296 = scmp.lt.s32.totalorder %s25, 0
        %s297 = scalar_select %p296, %s25, 0
        %s298 = smul.addr %s297, 8
        %s299 = scalar_lea.vmem %s6, %s298
        %p300 = scmp.lt.s32.totalorder %s25, 0
        %s301 = scalar_select %p300, %s25, 0
        %s302 = smul.addr %s301, 8
        %s303 = scalar_lea.vmem %s6, %s302
        %s305 = smul.u32 %s26, 4
        %s306 = smul.addr %s305, 4
        %s307 = scalar_lea.vmem [#allocation8], %s306
        %v308 = vld [vmem:[%s307] sm:$0xf]
        %v309 = vld [vmem:[%s307 + $0x4] sm:$0xf]
        %v310 = vld [vmem:[%s307 + $0x8] sm:$0xf]
        %v311 = vld [vmem:[%s307 + $0xc] sm:$0xf]
        %s312 = scalar_lea.vmem %s3, %s26
        %v313 = vld [vmem:[%s312] sm:$0x1]
        %p314 = scmp.eq.s32.totalorder %s26, 0
        %v315 = vld [vmem:[#allocation4] sm:$0xf]
        %v316 = vld [vmem:[#allocation2] sm:$0xff]
        %v317 = vpack.c.bf16 %v316, %v316
        %s318 = scalar_select %p314, 1, 0
        %v319 = vstv %s318
        %vm320 = vcmp.eq.s32.totalorder %v319, 1
        %v321 = vsel %vm320, %v315, %v317
        %v323 = vperm.slane %v313, 0
        %v329 = vunpack.c.l.b16 %v308
        %v330 = vunpack.c.l.b16 %v309
        %v331 = vunpack.c.l.b16 %v310
        %v332 = vunpack.c.l.b16 %v311
        %v333 = vpack.c.b16 %v330, %v329
        %v334 = vpack.c.b16 %v332, %v331
        %vm337 = vcmask 261120
        %v339 = vsel %vm337, %v321, 0
        %341 = vmatpush.bf16.msra.mxu0 0
        %342 = vmatpush.bf16.msra.mxu0 0
        %343 = vmatpush.bf16.msra.mxu0 0
        %344 = vmatpush.bf16.msra.mxu0 0
        %345 = vmatpush.bf16.msra.mxu0 0
        %346 = vmatpush.bf16.msra.mxu0 0
        %347 = vmatpush.bf16.msra.mxu0 %v334
        %348 = vmatpush.bf16.msra.mxu0 %v333
        %349 = vmatmul.bf16.gmra.mxu0 %v339
        %v350 = vpop.f32.mrf.mxu0
        %v351 = vadd.f32 %v323, %v350
        %v352 = vpop.f32.mrf.mxu0
        %353 = vdwg.mxu0
        %v354 = vld [vmem:[#allocation6] sm:$0xf]
        %v355 = vunpack.c.l.bf16 %v354
        %v356 = vadd.f32 %v351, %v355
        %v357 = vxor.u32 %v356, 2147483648
        %v358 = vmul.f32 %v357, 1.442695
        %v359 = vpow.pop %v358
        %v360 = vadd.f32 %v359, 1.0
        %v361 = vrcp.pop %v360
        %v362 = vmul.f32 %v360, %v361
        %v363 = vsub.f32 1.0, %v362
        %v364 = vmul.f32 %v361, %v363
        %v365 = vadd.f32 %v361, %v364
        %vm366 = vweird.f32 %v360
        %vm367 = vweird.f32 %v361
        %vm368 = vmor %vm366, %vm367
        %v369 = vsel %vm368, %v361, %v365
        %v370 = vand.u32 2147483647, %v360
        %vm371 = vcmp.eq.f32.partialorder %v370, 8.507059e+37
        %v372 = vand.u32 %v360, 2147483648
        %v373 = vor.u32 1.1754944e-38, %v372
        %v374 = vsel %vm371, %v373, %v369
        %v375 = vmul.f32 1.0, %v374
        %v376 = vmul.f32 %v356, %v375
        %p377 = scmp.lt.s32.totalorder %s26, 1
        // Predicated region
        $region57: #{tpu_custom_call.1} parent=43 // pred_check
          %p378 = pneg %p377
        $region58: #{tpu_custom_call.1} parent=43 // pred_check_branch
          %380 = sbr.rel (%p378) target = $region60
        $region59: #{tpu_custom_call.1} parent=43 // pred_region
          %381 = vst.msk [vmem:[#allocation2] sm:$0xff] %vm337, %v376
        $region60: #{tpu_custom_call.1} parent=43 // pred_fallthru
          _
        %p382 = scmp.eq.s32.totalorder %s26, 1
        // Predicated region
        $region61: #{tpu_custom_call.1} parent=43 // pred_check
          %p383 = pneg %p382
        $region62: #{tpu_custom_call.1} parent=43 // pred_check_branch
          %385 = sbr.rel (%p383) target = $region64
        $region63: #{tpu_custom_call.1} parent=43 // pred_region
          %v386 = vld [vmem:[%s4] sm:$0x1]
          %v388 = vperm.slane %v386, 0
          %v390 = vmul.f32 %v376, %v388
          %v391 = vsel %vm337, %v390, 0.0
          %392 = vadd.xlane.f32.xlu0 %v391
          %v393 = vpop.xlane.xlu0 %392
          %v394 = vld [vmem:[#allocation3] sm:$0x1]
          %v396 = vperm.slane %v394, 0
          %v398 = vadd.f32 %v393, %v396
          %vm399 = vcmask 7168
          %400 = vst.msk [vmem:[%s303] sm:$0xff] %vm399, %v398
        $region64: #{tpu_custom_call.1} parent=43 // pred_fallthru
          _
        %p401 = scmp.lt.s32.totalorder %s25, 0
        %s402 = scalar_select %p401, %s25, 0
        %s403 = smul.addr %s402, 8
        %s404 = scalar_lea.vmem %s6, %s403
        // Predicated region
        $region65: #{tpu_custom_call.1} parent=43 // pred_check
          %p405 = pneg %p187
        $region66: #{tpu_custom_call.1} parent=43 // pred_check_branch
          %407 = sbr.rel (%p405) target = $region68
        $region67: #{tpu_custom_call.1} parent=43 // pred_region
          _
        $region68: #{tpu_custom_call.1} parent=43 // pred_fallthru
          _
        // Predicated region
        $region69: #{tpu_custom_call.1} parent=43 // pred_check
          %p408 = pneg %p187
        $region70: #{tpu_custom_call.1} parent=43 // pred_check_branch
          %410 = sbr.rel (%p408) target = $region72
        $region71: #{tpu_custom_call.1} parent=43 // pred_region
          %p411 = scmp.lt.s32.totalorder %s25, 0
          %s412 = scalar_select %p411, %s25, 0
          %s413 = smul.addr %s412, 8
          %s414 = scalar_lea.vmem %s6, %s413
        $region72: #{tpu_custom_call.1} parent=43 // pred_fallthru
          _
      $region44: #{tpu_custom_call.1} parent=5 // pred_fallthru
        _
      %p415 = scmp.le.s32.totalorder 2, %s16
      // Predicated region
      $region73: #{tpu_custom_call.1} parent=5 // pred_check
        %p416 = pneg %p415
      $region74: #{tpu_custom_call.1} parent=5 // pred_check_branch
        %418 = sbr.rel (%p416) target = $region76
      $region75: #{tpu_custom_call.1} parent=5 // pred_region
        %s419 = ssub.s32 %s16, 2
      $region76: #{tpu_custom_call.1} parent=5 // pred_fallthru
        _
    $region6: #{tpu_custom_call.1} parent=1 // loop_footer
      %s20 = sadd.s32 1, %s16
    $region7: #{tpu_custom_call.1} parent=1 // loop_footer_branch
      %15 = sbr.rel target = $region3
    $region8: #{tpu_custom_call.1} parent=1 // loop_exit
      _
    %420 = vsyncpa [#allocation5], 1
    %s421 = scalar_lea.sflag [#allocation5], 1
    %422 = vsyncpa %s421, 1
    %423 = vsyncpa [#allocation7], 1

</llo_original>
